<compile_context>
chip_gen: v5e
topology: v5e:2x2
jax: 0.10.0
libtpu: 0.0.40
codegen_flags: <defaults>
</compile_context>

<pallas_src>
import jax
import jax.numpy as jnp
from jax import lax
from jax.experimental import pallas as pl
from jax.experimental.pallas import tpu as pltpu


def _net_kernel(x_ref, w1t_ref, b1t_ref, w2t_ref, b2t_ref, o_ref):
    x = x_ref[...]                                   # (TB, obs), batch-major input tile

    # Layer 1, feature-major: (hidden, obs) x (TB, obs)^T -> (hidden, TB).
    h = lax.dot_general(
        w1t_ref[...], x,
        dimension_numbers=(((1,), (1,)), ((), ())),
        preferred_element_type=jnp.float32,
    )
    h = jnp.maximum(h + b1t_ref[...], 0.0)           # bias (hidden,1) lane-broadcast; lane-dense ReLU

    # Layer 2: (act, hidden) @ (hidden, TB) -> (act, TB).
    logits = jnp.dot(w2t_ref[...], h, preferred_element_type=jnp.float32) + b2t_ref[...]

    # Numerically stable softmax over the action (sublane) axis, exact divide.
    m = jnp.max(logits, axis=0, keepdims=True)       # (1, TB)
    e = jnp.exp(logits - m)                          # lane-dense EUP
    denom = jnp.sum(e, axis=0, keepdims=True)        # (1, TB)
    o_ref[...] = (e / denom).astype(o_ref.dtype)     # (act, TB) stored directly, no transpose


def _tile_plan(batch, *, max_tile=2048):
    """Pick (batch_tile, padded_batch): lane-aligned tiles, >=2 grid steps when possible."""
    lane = 128
    b128 = max(lane, ((batch + lane - 1) // lane) * lane)     # lane-dense output stores
    # >= 2 tiles (v7x megacore) whenever there is enough work; cap tile rows so the
    # lane-padded x buffer (tb * 512 B, double-buffered) stays tiny even on v7x 64 MiB VMEM.
    n_target = max(2, (b128 + max_tile - 1) // max_tile)
    tb = (b128 + n_target - 1) // n_target
    tb = max(lane, (tb // lane) * lane)                       # tile is a multiple of 128 lanes
    b_pad = ((b128 + tb - 1) // tb) * tb                      # batch is a multiple of the tile
    return tb, b_pad


def net_forward_t(x, w1, b1, w2, b2, *, max_tile=2048):
    """Feature-major forward.

    x: (B, obs); w1: (obs, 32); b1: (32,); w2: (32, A); b2: (A,)
    Returns (probs_t, B) where probs_t is (A, b_pad) — lane-dense, batch on lanes.
    Columns [0, B) are valid; the rest are padding.
    """
    B, obs = x.shape
    hidden = w1.shape[1]
    act = w2.shape[1]

    tb, b_pad = _tile_plan(B, max_tile=max_tile)
    if b_pad != B:
        x = jnp.pad(x, ((0, b_pad - B), (0, 0)))

    # Feature-major parameter layouts (one-time cost, tiny arrays).
    w1t = w1.T                              # (hidden, obs)
    b1t = b1.reshape(hidden, 1)             # (hidden, 1)
    w2t = w2.T                              # (act, hidden)
    b2t = b2.reshape(act, 1)                # (act, 1)

    grid = (b_pad // tb,)

    flops = 2 * b_pad * (obs * hidden + hidden * act)
    bytes_accessed = 4 * (b_pad * obs + b_pad * act
                          + obs * hidden + hidden + hidden * act + act)

    out_t = pl.pallas_call(
        _net_kernel,
        out_shape=jax.ShapeDtypeStruct((act, b_pad), jnp.float32),
        grid=grid,
        in_specs=[
            # Activations: streamed, one batch tile per grid step.
            pl.BlockSpec((tb, obs), lambda i: (i, 0)),
            # Parameters: constant index_maps -> VMEM-resident across steps.
            pl.BlockSpec((hidden, obs), lambda i: (0, 0)),
            pl.BlockSpec((hidden, 1), lambda i: (0, 0)),
            pl.BlockSpec((act, hidden), lambda i: (0, 0)),
            pl.BlockSpec((act, 1), lambda i: (0, 0)),
        ],
        # Lane-dense output: (action, batch) with 128-multiple batch tiles.
        out_specs=pl.BlockSpec((act, tb), lambda i: (0, i)),
        compiler_params=pltpu.CompilerParams(
            dimension_semantics=("parallel",),   # shard batch tiles across TCs (v7x)
        ),
        cost_estimate=pl.CostEstimate(
            flops=flops,
            transcendentals=b_pad * act,
            bytes_accessed=bytes_accessed,
        ),
    )(x, w1t, b1t, w2t, b2t)

    return out_t, B


def net_forward(x, w1, b1, w2, b2, *, max_tile=2048):
    """Module-semantics forward: returns softmax probabilities of shape (B, A).

    Consumers that can work in (A, B) layout (e.g. fused argmax/sampling over
    actions) should call net_forward_t directly and skip this transpose.
    """
    out_t, B = net_forward_t(x, w1, b1, w2, b2, max_tile=max_tile)
    return out_t[:, :B].T


if __name__ == "__main__":
    # Small, module-consistent shapes; batch = many GA population rollouts
    # folded into one call (two 128-row tiles -> exercises the multi-tile path).
    batch, obs_size, hidden, action_size = 256, 16, 32, 8

    key = jax.random.PRNGKey(0)
    kx, k1, k2, k3, k4 = jax.random.split(key, 5)

    x = jax.random.normal(kx, (batch, obs_size), dtype=jnp.float32)

    # Deterministic synthetic parameters (uniform, PyTorch-Linear-like scale).
    bound1 = 1.0 / (obs_size ** 0.5)
    bound2 = 1.0 / (hidden ** 0.5)
    w1 = jax.random.uniform(k1, (obs_size, hidden), jnp.float32, -bound1, bound1)
    b1 = jax.random.uniform(k2, (hidden,), jnp.float32, -bound1, bound1)
    w2 = jax.random.uniform(k3, (hidden, action_size), jnp.float32, -bound2, bound2)
    b2 = jax.random.uniform(k4, (action_size,), jnp.float32, -bound2, bound2)

    out = net_forward(x, w1, b1, w2, b2)
    jax.block_until_ready(out)

    # Pure-JAX reference for correctness.
    def ref_fn(xx):
        h = jnp.maximum(xx @ w1 + b1, 0.0)
        return jax.nn.softmax(h @ w2 + b2, axis=1)

    ref = ref_fn(x)
    assert out.shape == (batch, action_size)
    assert bool(jnp.all(jnp.abs(jnp.sum(out, axis=1) - 1.0) < 1e-5))
    assert bool(jnp.max(jnp.abs(out - ref)) < 1e-5)

    # Ragged / small-batch path (padding rows sliced off correctly).
    x_small = x[:5]
    out_small = net_forward(x_small, w1, b1, w2, b2)
    jax.block_until_ready(out_small)
    assert out_small.shape == (5, action_size)
    assert bool(jnp.max(jnp.abs(out_small - ref_fn(x_small))) < 1e-5)

    print("KERNEL_OK")
</pallas_src>

<mosaic_0001>
module attributes {stable_mosaic.version = 11 : i64} {
  func.func @_net_kernel(%arg0: i32, %arg1: memref<128x16xf32, #tpu.memory_space<vmem>>, %arg2: memref<32x16xf32, #tpu.memory_space<vmem>>, %arg3: memref<32x1xf32, #tpu.memory_space<vmem>>, %arg4: memref<8x32xf32, #tpu.memory_space<vmem>>, %arg5: memref<8x1xf32, #tpu.memory_space<vmem>>, %arg6: memref<8x128xf32, #tpu.memory_space<vmem>>) attributes {dimension_semantics = [#tpu.dimension_semantics<parallel>], iteration_bounds = array<i64: 2>, scalar_prefetch = 0 : i64, scratch_operands = 0 : i64, tpu.core_type = #tpu.core_type<tc>, window_params = [{transform_indices = @transform_0, window_bounds = array<i64: 128, 16>}, {pipeline_mode = #tpu.pipeline_mode<synchronous>, transform_indices = @transform_1, window_bounds = array<i64: 32, 16>}, {pipeline_mode = #tpu.pipeline_mode<synchronous>, transform_indices = @transform_2, window_bounds = array<i64: 32, 1>}, {pipeline_mode = #tpu.pipeline_mode<synchronous>, transform_indices = @transform_3, window_bounds = array<i64: 8, 32>}, {pipeline_mode = #tpu.pipeline_mode<synchronous>, transform_indices = @transform_4, window_bounds = array<i64: 8, 1>}, {transform_indices = @transform_5, window_bounds = array<i64: 8, 128>}]} {
    %c0 = arith.constant 0 : index
    %c0_0 = arith.constant 0 : index
    %0 = vector.load %arg1[%c0, %c0_0] : memref<128x16xf32, #tpu.memory_space<vmem>>, vector<128x16xf32>
    %c0_1 = arith.constant 0 : index
    %c0_2 = arith.constant 0 : index
    %1 = vector.load %arg2[%c0_1, %c0_2] : memref<32x16xf32, #tpu.memory_space<vmem>>, vector<32x16xf32>
    %cst = arith.constant dense<0.000000e+00> : vector<32x128xf32>
    %2 = tpu.matmul %1, %0, %cst {dimension_numbers = #tpu.dot_dimension_numbers<[1], [1], [0], [0], [0, 0, 1, 0], [], []>} : vector<32x16xf32>, vector<128x16xf32>, vector<32x128xf32> -> vector<32x128xf32>
    %c0_3 = arith.constant 0 : index
    %c0_4 = arith.constant 0 : index
    %3 = vector.load %arg3[%c0_3, %c0_4] : memref<32x1xf32, #tpu.memory_space<vmem>>, vector<32x1xf32>
    %4 = vector.broadcast %3 : vector<32x1xf32> to vector<32x128xf32>
    %5 = arith.addf %2, %4 : vector<32x128xf32>
    %cst_5 = arith.constant 0.000000e+00 : f32
    %6 = vector.broadcast %cst_5 : f32 to vector<32x128xf32>
    %7 = arith.maximumf %5, %6 : vector<32x128xf32>
    %c0_6 = arith.constant 0 : index
    %c0_7 = arith.constant 0 : index
    %8 = vector.load %arg4[%c0_6, %c0_7] : memref<8x32xf32, #tpu.memory_space<vmem>>, vector<8x32xf32>
    %cst_8 = arith.constant dense<0.000000e+00> : vector<8x128xf32>
    %9 = tpu.matmul %8, %7, %cst_8 {dimension_numbers = #tpu.dot_dimension_numbers<[1], [0], [0], [1], [0, 0, 1, 1], [], []>} : vector<8x32xf32>, vector<32x128xf32>, vector<8x128xf32> -> vector<8x128xf32>
    %c0_9 = arith.constant 0 : index
    %c0_10 = arith.constant 0 : index
    %10 = vector.load %arg5[%c0_9, %c0_10] : memref<8x1xf32, #tpu.memory_space<vmem>>, vector<8x1xf32>
    %11 = vector.broadcast %10 : vector<8x1xf32> to vector<8x128xf32>
    %12 = arith.addf %9, %11 : vector<8x128xf32>
    %cst_11 = arith.constant dense<0xFF800000> : vector<128xf32>
    %13 = vector.multi_reduction <maximumf>, %12, %cst_11 [0] : vector<8x128xf32> to vector<128xf32>
    %14 = vector.shape_cast %13 : vector<128xf32> to vector<1x128xf32>
    %15 = vector.broadcast %14 : vector<1x128xf32> to vector<8x128xf32>
    %16 = arith.subf %12, %15 : vector<8x128xf32>
    %17 = math.exp %16 : vector<8x128xf32>
    %cst_12 = arith.constant dense<0.000000e+00> : vector<128xf32>
    %18 = vector.multi_reduction <add>, %17, %cst_12 [0] : vector<8x128xf32> to vector<128xf32>
    %19 = vector.shape_cast %18 : vector<128xf32> to vector<1x128xf32>
    %20 = vector.broadcast %19 : vector<1x128xf32> to vector<8x128xf32>
    %21 = arith.divf %17, %20 : vector<8x128xf32>
    %c0_13 = arith.constant 0 : index
    %c0_14 = arith.constant 0 : index
    %22 = vector.load %arg6[%c0_13, %c0_14] : memref<8x128xf32, #tpu.memory_space<vmem>>, vector<8x128xf32>
    tpu.vector_store %arg6[%c0_13, %c0_14], %21 {strides = array<i32>} : memref<8x128xf32, #tpu.memory_space<vmem>>, vector<8x128xf32>,
    return
  }
  func.func @transform_0(%arg0: i32) -> (i32, i32) {
    %c0_i32 = arith.constant 0 : i32
    %c0_i32_0 = arith.constant 0 : i32
    return %arg0, %c0_i32 : i32, i32
  }
  func.func @transform_1(%arg0: i32) -> (i32, i32) {
    %c0_i32 = arith.constant 0 : i32
    %c0_i32_0 = arith.constant 0 : i32
    %c0_i32_1 = arith.constant 0 : i32
    return %c0_i32, %c0_i32_0 : i32, i32
  }
  func.func @transform_2(%arg0: i32) -> (i32, i32) {
    %c0_i32 = arith.constant 0 : i32
    %c0_i32_0 = arith.constant 0 : i32
    %c0_i32_1 = arith.constant 0 : i32
    return %c0_i32, %c0_i32_0 : i32, i32
  }
  func.func @transform_3(%arg0: i32) -> (i32, i32) {
    %c0_i32 = arith.constant 0 : i32
    %c0_i32_0 = arith.constant 0 : i32
    %c0_i32_1 = arith.constant 0 : i32
    return %c0_i32, %c0_i32_0 : i32, i32
  }
  func.func @transform_4(%arg0: i32) -> (i32, i32) {
    %c0_i32 = arith.constant 0 : i32
    %c0_i32_0 = arith.constant 0 : i32
    %c0_i32_1 = arith.constant 0 : i32
    return %c0_i32, %c0_i32_0 : i32, i32
  }
  func.func @transform_5(%arg0: i32) -> (i32, i32) {
    %c0_i32 = arith.constant 0 : i32
    %c0_i32_0 = arith.constant 0 : i32
    return %c0_i32, %arg0 : i32, i32
  }
}

</mosaic_0001>

<llo_original>
// kernel: tpu_custom_call.1
$region0: #{tpu_custom_call.1}
  #allocation0 [shape = 'u32[]', space=smem, size = 0x4, offset = 0x4, fixed_abs, tag = 'smem constant byte address 0x4 - core index']
  #allocation1 [shape = 'u32[72,128]{1,0:T(1,128)}', space=vmem, size = 0x9000, scoped, tag = 'internal scratch']
  %s0 = inlined_call_operand.vmem [shape: f32[256,16], index: 0, kind: input, shape index: {}]
  %s1 = inlined_call_operand.vmem [shape: f32[32,16], index: 1, kind: input, shape index: {}]
  %s2 = inlined_call_operand.vmem [shape: f32[32,1], index: 2, kind: input, shape index: {}]
  %s3 = inlined_call_operand.vmem [shape: f32[8,32], index: 3, kind: input, shape index: {}]
  %s4 = inlined_call_operand.vmem [shape: f32[8,1], index: 4, kind: input, shape index: {}]
  %s5 = inlined_call_operand.hbm [shape: f32[8,256], index: 5, kind: output, shape index: {}]
  %s6 = sld [smem:[#allocation0]]
  $region53: #{tpu_custom_call.1} parent=0
    _
  %s8 = ssub.s32 1, %s6
  %s9 = scalar_select 0, %s8, %s6
  $region1: #{tpu_custom_call.1} parent=0
    #allocation2 [shape = 'u8[8192]{0}', space=vmem, size = 0x2000, scoped, tag = 'output window, operand 0']
    #allocation3 [shape = 's32[2]{0}', space=sflag, size = 0x8, scoped, tag = 'scoped memory for tpu_custom_call.1']
    %10 = vsyncpa [#allocation3], 0
    %s11 = scalar_lea.sflag [#allocation3], 1
    %12 = vsyncpa %s11, 0
    loop: start=0, step=1, limit=4
    $region2: #{tpu_custom_call.1} parent=1 // loop_pre_header
      _
    $region3: #{tpu_custom_call.1} parent=1 // loop_header
      %s14 = sphi 0, %s18
      %p15 = scmp.ge.s32.totalorder %s14, 4
      %s24 = sphi 0, %s26
      %s27 = sphi 0, %s24
      %s28 = sphi 0, %s27
      %s44 = sphi 0, %s28
      %s48 = sphi 0, %s48
      %s50 = sphi 0, %s48
      %s51 = sphi 0, %s50
      %s65 = sphi 0, %s51
      %s69 = sphi 0, %s69
      %s71 = sphi 0, %s69
      %s72 = sphi 0, %s71
      %s86 = sphi 0, %s72
      %s90 = sphi 0, %s90
      %s92 = sphi 0, %s90
      %s93 = sphi 0, %s92
      %s107 = sphi 0, %s93
      %s111 = sphi 0, %s111
      %s113 = sphi 0, %s111
      %s114 = sphi 0, %s113
      %s128 = sphi 0, %s114
      %s134 = sphi 0, %s136
      %s137 = sphi 0, %s134
      %s138 = sphi 0, %s137
      %s154 = sphi 0, %s138
    $region4: #{tpu_custom_call.1} parent=1 // loop_header_branch
      %17 = sbr.rel (%p15) target = $region8
    $region5: #{tpu_custom_call.1} parent=1 // loop_body
      %s19 = ssub.s32 %s14, 1
      %s20 = ssub.s32 %s14, 2
      %s21 = sadd.s32 %s14, 1
      %s22 = ssub.s32 %s14, %s21
      %p23 = scmp.eq.s32.totalorder %s22, 0
      %s25 = sadd.s32 %s24, 1
      %s26 = scalar_select %p23, %s24, %s25
      %p29 = pneg %p23
      %p30 = scmp.eq.s32.totalorder %s14, 1
      %p31 = por %p29, %p30
      %p32 = scmp.ne.s32.totalorder %s24, %s27
      %p33 = scmp.eq.s32.totalorder %s14, 0
      %p34 = por %p32, %p33
      %p35 = scmp.ne.s32.totalorder %s24, %s27
      %p36 = scmp.eq.s32.totalorder %s19, 1
      %p37 = por %p35, %p36
      %p38 = scmp.ne.s32.totalorder %s27, %s28
      %p39 = scmp.eq.s32.totalorder %s19, 0
      %p40 = por %p38, %p39
      %p41 = scmp.ne.s32.totalorder %s27, %s28
      %p42 = scmp.eq.s32.totalorder %s20, 1
      %p43 = por %p41, %p42
      %p45 = scmp.ne.s32.totalorder %s28, %s44
      %p46 = scmp.eq.s32.totalorder %s20, 0
      %p47 = por %p45, %p46
      %s49 = sadd.s32 %s48, 1
      %p52 = scmp.eq.s32.totalorder %s14, 1
      %p53 = scmp.ne.s32.totalorder %s48, %s50
      %p54 = scmp.eq.s32.totalorder %s14, 0
      %p55 = por %p53, %p54
      %p56 = scmp.ne.s32.totalorder %s48, %s50
      %p57 = scmp.eq.s32.totalorder %s19, 1
      %p58 = por %p56, %p57
      %p59 = scmp.ne.s32.totalorder %s50, %s51
      %p60 = scmp.eq.s32.totalorder %s19, 0
      %p61 = por %p59, %p60
      %p62 = scmp.ne.s32.totalorder %s50, %s51
      %p63 = scmp.eq.s32.totalorder %s20, 1
      %p64 = por %p62, %p63
      %p66 = scmp.ne.s32.totalorder %s51, %s65
      %p67 = scmp.eq.s32.totalorder %s20, 0
      %p68 = por %p66, %p67
      %s70 = sadd.s32 %s69, 1
      %p73 = scmp.eq.s32.totalorder %s14, 1
      %p74 = scmp.ne.s32.totalorder %s69, %s71
      %p75 = scmp.eq.s32.totalorder %s14, 0
      %p76 = por %p74, %p75
      %p77 = scmp.ne.s32.totalorder %s69, %s71
      %p78 = scmp.eq.s32.totalorder %s19, 1
      %p79 = por %p77, %p78
      %p80 = scmp.ne.s32.totalorder %s71, %s72
      %p81 = scmp.eq.s32.totalorder %s19, 0
      %p82 = por %p80, %p81
      %p83 = scmp.ne.s32.totalorder %s71, %s72
      %p84 = scmp.eq.s32.totalorder %s20, 1
      %p85 = por %p83, %p84
      %p87 = scmp.ne.s32.totalorder %s72, %s86
      %p88 = scmp.eq.s32.totalorder %s20, 0
      %p89 = por %p87, %p88
      %s91 = sadd.s32 %s90, 1
      %p94 = scmp.eq.s32.totalorder %s14, 1
      %p95 = scmp.ne.s32.totalorder %s90, %s92
      %p96 = scmp.eq.s32.totalorder %s14, 0
      %p97 = por %p95, %p96
      %p98 = scmp.ne.s32.totalorder %s90, %s92
      %p99 = scmp.eq.s32.totalorder %s19, 1
      %p100 = por %p98, %p99
      %p101 = scmp.ne.s32.totalorder %s92, %s93
      %p102 = scmp.eq.s32.totalorder %s19, 0
      %p103 = por %p101, %p102
      %p104 = scmp.ne.s32.totalorder %s92, %s93
      %p105 = scmp.eq.s32.totalorder %s20, 1
      %p106 = por %p104, %p105
      %p108 = scmp.ne.s32.totalorder %s93, %s107
      %p109 = scmp.eq.s32.totalorder %s20, 0
      %p110 = por %p108, %p109
      %s112 = sadd.s32 %s111, 1
      %p115 = scmp.eq.s32.totalorder %s14, 1
      %p116 = scmp.ne.s32.totalorder %s111, %s113
      %p117 = scmp.eq.s32.totalorder %s14, 0
      %p118 = por %p116, %p117
      %p119 = scmp.ne.s32.totalorder %s111, %s113
      %p120 = scmp.eq.s32.totalorder %s19, 1
      %p121 = por %p119, %p120
      %p122 = scmp.ne.s32.totalorder %s113, %s114
      %p123 = scmp.eq.s32.totalorder %s19, 0
      %p124 = por %p122, %p123
      %p125 = scmp.ne.s32.totalorder %s113, %s114
      %p126 = scmp.eq.s32.totalorder %s20, 1
      %p127 = por %p125, %p126
      %p129 = scmp.ne.s32.totalorder %s114, %s128
      %p130 = scmp.eq.s32.totalorder %s20, 0
      %p131 = por %p129, %p130
      %s132 = ssub.s32 %s14, %s21
      %p133 = scmp.eq.s32.totalorder %s132, 0
      %s135 = sadd.s32 %s134, 1
      %s136 = scalar_select %p133, %s134, %s135
      %p139 = pneg %p133
      %p140 = scmp.eq.s32.totalorder %s14, 1
      %p141 = por %p139, %p140
      %p142 = scmp.ne.s32.totalorder %s134, %s137
      %p143 = scmp.eq.s32.totalorder %s14, 0
      %p144 = por %p142, %p143
      %p145 = scmp.ne.s32.totalorder %s134, %s137
      %p146 = scmp.eq.s32.totalorder %s19, 1
      %p147 = por %p145, %p146
      %p148 = scmp.ne.s32.totalorder %s137, %s138
      %p149 = scmp.eq.s32.totalorder %s19, 0
      %p150 = por %p148, %p149
      %p151 = scmp.ne.s32.totalorder %s137, %s138
      %p152 = scmp.eq.s32.totalorder %s20, 1
      %p153 = por %p151, %p152
      %p155 = scmp.ne.s32.totalorder %s138, %s154
      %p156 = scmp.eq.s32.totalorder %s20, 0
      %p157 = por %p155, %p156
      %p158 = scmp.le.s32.totalorder 1, %s14
      %p159 = scmp.lt.s32.totalorder %s14, 3
      %p160 = pnand %p158, %p159
      %p161 = pneg %p160
      // Predicated region
      $region9: #{tpu_custom_call.1} parent=5 // pred_check
        _
      $region10: #{tpu_custom_call.1} parent=5 // pred_check_branch
        %163 = sbr.rel (%p160) target = $region12
      $region11: #{tpu_custom_call.1} parent=5 // pred_region
        %s164 = ssub.s32 %s14, 1
        // Predicated region
        $region13: #{tpu_custom_call.1} parent=11 // pred_check
          %p165 = pneg %p61
        $region14: #{tpu_custom_call.1} parent=11 // pred_check_branch
          %167 = sbr.rel (%p165) target = $region16
        $region15: #{tpu_custom_call.1} parent=11 // pred_region
          _
        $region16: #{tpu_custom_call.1} parent=11 // pred_fallthru
          _
        // Predicated region
        $region17: #{tpu_custom_call.1} parent=11 // pred_check
          %p168 = pneg %p82
        $region18: #{tpu_custom_call.1} parent=11 // pred_check_branch
          %170 = sbr.rel (%p168) target = $region20
        $region19: #{tpu_custom_call.1} parent=11 // pred_region
          _
        $region20: #{tpu_custom_call.1} parent=11 // pred_fallthru
          _
        // Predicated region
        $region21: #{tpu_custom_call.1} parent=11 // pred_check
          %p171 = pneg %p103
        $region22: #{tpu_custom_call.1} parent=11 // pred_check_branch
          %173 = sbr.rel (%p171) target = $region24
        $region23: #{tpu_custom_call.1} parent=11 // pred_region
          _
        $region24: #{tpu_custom_call.1} parent=11 // pred_fallthru
          _
        // Predicated region
        $region25: #{tpu_custom_call.1} parent=11 // pred_check
          %p174 = pneg %p124
        $region26: #{tpu_custom_call.1} parent=11 // pred_check_branch
          %176 = sbr.rel (%p174) target = $region28
        $region27: #{tpu_custom_call.1} parent=11 // pred_region
          _
        $region28: #{tpu_custom_call.1} parent=11 // pred_fallthru
          _
      $region12: #{tpu_custom_call.1} parent=5 // pred_fallthru
        _
      %p177 = scmp.lt.s32.totalorder %s14, 2
      // Predicated region
      $region29: #{tpu_custom_call.1} parent=5 // pred_check
        %p178 = pneg %p177
      $region30: #{tpu_custom_call.1} parent=5 // pred_check_branch
        %180 = sbr.rel (%p178) target = $region32
      $region31: #{tpu_custom_call.1} parent=5 // pred_region
        // Predicated region
        $region33: #{tpu_custom_call.1} parent=31 // pred_check
          %p181 = pneg %p34
        $region34: #{tpu_custom_call.1} parent=31 // pred_check_branch
          %183 = sbr.rel (%p181) target = $region36
        $region35: #{tpu_custom_call.1} parent=31 // pred_region
          %s184 = smul.u32 16, %s14
          %p185 = scmp.lt.s32.totalorder %s184, 31
          %s186 = scalar_select %p185, %s184, 31
          %s187 = smul.addr %s186, 8
          %s188 = scalar_lea.vmem %s0, %s187
          %s189 = smul.u32 16, %s14
        $region36: #{tpu_custom_call.1} parent=31 // pred_fallthru
          _
      $region32: #{tpu_custom_call.1} parent=5 // pred_fallthru
        _
      %p190 = scmp.le.s32.totalorder 1, %s14
      %p191 = scmp.lt.s32.totalorder %s14, 3
      %p192 = pnand %p190, %p191
      %p193 = pneg %p192
      // Predicated region
      $region37: #{tpu_custom_call.1} parent=5 // pred_check
        _
      $region38: #{tpu_custom_call.1} parent=5 // pred_check_branch
        %195 = sbr.rel (%p192) target = $region40
      $region39: #{tpu_custom_call.1} parent=5 // pred_region
        %s196 = ssub.s32 %s14, 1
        %s197 = smul.u32 16, %s19
        %p198 = scmp.lt.s32.totalorder %s197, 31
        %s199 = scalar_select %p198, %s197, 31
        %s200 = smul.addr %s199, 8
        %s201 = scalar_lea.vmem %s0, %s200
        %p202 = pneg %p40
        %p203 = pneg %p37
        %p204 = pneg %p61
        %p205 = pneg %p58
        %p206 = pneg %p82
        %p207 = pneg %p79
        %p208 = pneg %p103
        %p209 = pneg %p100
        %p210 = pneg %p124
        %p211 = pneg %p121
        %p212 = pneg %p150
        %p213 = pneg %p147
        %s214 = sand.u32 %s137, 1
        %s215 = scalar_lea.sflag [#allocation3], %s214
        %s216 = sand.u32 %s137, 1
        %s217 = smul.addr %s216, 8
        %s218 = scalar_lea.vmem [#allocation2], %s217
        %s219 = smul.u32 16, %s19
        %p220 = scmp.lt.s32.totalorder %s219, 31
        %s221 = scalar_select %p220, %s219, 31
        %s222 = smul.addr %s221, 8
        %s223 = scalar_lea.vmem %s0, %s222
        %s224 = smul.u32 16, %s19
        %v225 = vld [vmem:[%s223] sm:$0xff]
        %v226 = vld [vmem:[%s223 + $0x8] sm:$0xff]
        %v227 = vld [vmem:[%s223 + $0x10] sm:$0xff]
        %v228 = vld [vmem:[%s223 + $0x18] sm:$0xff]
        %v229 = vld [vmem:[%s223 + $0x20] sm:$0xff]
        %v230 = vld [vmem:[%s223 + $0x28] sm:$0xff]
        %v231 = vld [vmem:[%s223 + $0x30] sm:$0xff]
        %v232 = vld [vmem:[%s223 + $0x38] sm:$0xff]
        %v233 = vld [vmem:[%s223 + $0x40] sm:$0xff]
        %v234 = vld [vmem:[%s223 + $0x48] sm:$0xff]
        %v235 = vld [vmem:[%s223 + $0x50] sm:$0xff]
        %v236 = vld [vmem:[%s223 + $0x58] sm:$0xff]
        %v237 = vld [vmem:[%s223 + $0x60] sm:$0xff]
        %v238 = vld [vmem:[%s223 + $0x68] sm:$0xff]
        %v239 = vld [vmem:[%s223 + $0x70] sm:$0xff]
        %v240 = vld [vmem:[%s223 + $0x78] sm:$0xff]
        %v241 = vld [vmem:[%s1] sm:$0xff]
        %v242 = vld [vmem:[%s1 + $0x8] sm:$0xff]
        %v243 = vld [vmem:[%s1 + $0x10] sm:$0xff]
        %v244 = vld [vmem:[%s1 + $0x18] sm:$0xff]
        %v245 = vld [vmem:[%s2] sm:$0xff]
        %v246 = vld [vmem:[%s2 + $0x8] sm:$0xff]
        %v247 = vld [vmem:[%s2 + $0x10] sm:$0xff]
        %v248 = vld [vmem:[%s2 + $0x18] sm:$0xff]
        %250 = vset.pattern.permute.xlu0 0
        %251 = vperm.xlu0 %250, %v245
        %v252 = vpop.permute.xlu0 %251
        %255 = vset.pattern.permute.xlu0 0
        %256 = vperm.xlu0 %255, %v246
        %v257 = vpop.permute.xlu0 %256
        %260 = vset.pattern.permute.xlu0 0
        %261 = vperm.xlu0 %260, %v247
        %v262 = vpop.permute.xlu0 %261
        %265 = vset.pattern.permute.xlu0 0
        %266 = vperm.xlu0 %265, %v248
        %v267 = vpop.permute.xlu0 %266
        %vm269 = vcmask 130048
        %v271 = vsel %vm269, %v241, 0
        %v274 = vsel %vm269, %v242, 0
        %v277 = vsel %vm269, %v243, 0
        %v280 = vsel %vm269, %v244, 0
        %v283 = vsel %vm269, %v225, 0
        %v286 = vsel %vm269, %v226, 0
        %v289 = vsel %vm269, %v227, 0
        %v292 = vsel %vm269, %v228, 0
        %v295 = vsel %vm269, %v229, 0
        %v298 = vsel %vm269, %v230, 0
        %v301 = vsel %vm269, %v231, 0
        %v304 = vsel %vm269, %v232, 0
        %v307 = vsel %vm269, %v233, 0
        %v310 = vsel %vm269, %v234, 0
        %v313 = vsel %vm269, %v235, 0
        %v316 = vsel %vm269, %v236, 0
        %v319 = vsel %vm269, %v237, 0
        %v322 = vsel %vm269, %v238, 0
        %v325 = vsel %vm269, %v239, 0
        %v328 = vsel %vm269, %v240, 0
        %330 = vmatpush.xpose.msra.mxu0 %v328
        %331 = vmatpush.xpose.msra.mxu0 %v325
        %332 = vmatpush.xpose.msra.mxu0 %v322
        %333 = vmatpush.xpose.msra.mxu0 %v319
        %334 = vmatpush.xpose.msra.mxu0 %v316
        %335 = vmatpush.xpose.msra.mxu0 %v313
        %336 = vmatpush.xpose.msra.mxu0 %v310
        %337 = vmatpush.xpose.msra.mxu0 %v307
        %338 = vmatpush.xpose.msra.mxu0 %v304
        %339 = vmatpush.xpose.msra.mxu0 %v301
        %340 = vmatpush.xpose.msra.mxu0 %v298
        %341 = vmatpush.xpose.msra.mxu0 %v295
        %342 = vmatpush.xpose.msra.mxu0 %v292
        %343 = vmatpush.xpose.msra.mxu0 %v289
        %344 = vmatpush.xpose.msra.mxu0 %v286
        %345 = vmatpush.xpose.msra.mxu0 %v283
        %346 = vmatmul.f32.gmra.mxu0 %v271
        %v347 = vpop.f32.mrf.mxu0
        %v348 = vadd.f32 %v252, %v347
        %349 = vmatmul.f32.gmra.mxu0 %v274
        %v350 = vpop.f32.mrf.mxu0
        %v351 = vadd.f32 %v257, %v350
        %352 = vmatmul.f32.gmra.mxu0 %v277
        %v353 = vpop.f32.mrf.mxu0
        %v354 = vadd.f32 %v262, %v353
        %355 = vmatmul.f32.gmra.mxu0 %v280
        %v356 = vpop.f32.mrf.mxu0
        %v357 = vadd.f32 %v267, %v356
        %358 = vdwg.mxu0
        %v359 = vmax.f32 %v348, 0.0
        %v360 = vmax.f32 %v351, 0.0
        %v361 = vmax.f32 %v354, 0.0
        %v362 = vmax.f32 %v357, 0.0
        %v363 = vld [vmem:[%s3] sm:$0xff]
        %v364 = vld [vmem:[%s4] sm:$0xff]
        %366 = vset.pattern.permute.xlu0 0
        %367 = vperm.xlu0 %366, %v364
        %v368 = vpop.permute.xlu0 %367
        %vm370 = vcmask 261120
        %v372 = vsel %vm370, %v363, 0
        %374 = vmatpush.msra.mxu0 0.0
        %375 = vmatpush.msra.mxu0 0.0
        %376 = vmatpush.msra.mxu0 0.0
        %377 = vmatpush.msra.mxu0 0.0
        %378 = vmatpush.msra.mxu0 0.0
        %379 = vmatpush.msra.mxu0 0.0
        %380 = vmatpush.msra.mxu0 0.0
        %381 = vmatpush.msra.mxu0 0.0
        %382 = vmatpush.msra.mxu0 0.0
        %383 = vmatpush.msra.mxu0 0.0
        %384 = vmatpush.msra.mxu0 0.0
        %385 = vmatpush.msra.mxu0 0.0
        %386 = vmatpush.msra.mxu0 %v362
        %387 = vmatpush.msra.mxu0 %v361
        %388 = vmatpush.msra.mxu0 %v360
        %389 = vmatpush.msra.mxu0 %v359
        %390 = vmatmul.f32.gmra.mxu0 %v372
        %v391 = vpop.f32.mrf.mxu0
        %v392 = vadd.f32 %v368, %v391
        %393 = vdwg.mxu0
        %v394 = vrot.slane %v392, 4
        %v395 = vmax.f32 %v392, %v394
        %v396 = vrot.slane %v395, 2
        %v397 = vmax.f32 %v395, %v396
        %v398 = vrot.slane %v397, 1
        %v399 = vmax.f32 %v397, %v398
        %v400 = vsub.f32 %v392, %v399
        %v401 = vmul.f32 %v400, 1.442695
        %v402 = vpow.pop %v401
        %v403 = vrot.slane %v402, 4
        %v404 = vadd.f32 %v402, %v403
        %v405 = vrot.slane %v404, 2
        %v406 = vadd.f32 %v404, %v405
        %v407 = vrot.slane %v406, 1
        %v408 = vadd.f32 %v406, %v407
        %v409 = vrcp.pop %v408
        %v410 = vmul.f32 %v408, %v409
        %v411 = vsub.f32 1.0, %v410
        %v412 = vmul.f32 %v409, %v411
        %v413 = vadd.f32 %v409, %v412
        %vm414 = vweird.f32 %v408
        %vm415 = vweird.f32 %v409
        %vm416 = vmor %vm414, %vm415
        %v417 = vsel %vm416, %v409, %v413
        %v418 = vand.u32 2147483647, %v408
        %vm419 = vcmp.eq.f32.partialorder %v418, 8.507059e+37
        %v420 = vand.u32 %v408, 2147483648
        %v421 = vor.u32 1.1754944e-38, %v420
        %v422 = vsel %vm419, %v421, %v417
        %v423 = vmul.f32 %v402, %v422
        %424 = vst [vmem:[%s218] sm:$0xff] %v423
        %s425 = sand.u32 %s137, 1
        %s426 = scalar_lea.sflag [#allocation3], %s425
        %s427 = sand.u32 %s137, 1
        %s428 = smul.addr %s427, 8
        %s429 = scalar_lea.vmem [#allocation2], %s428
        // Predicated region
        $region41: #{tpu_custom_call.1} parent=39 // pred_check
          %p430 = pneg %p147
        $region42: #{tpu_custom_call.1} parent=39 // pred_check_branch
          %432 = sbr.rel (%p430) target = $region44
        $region43: #{tpu_custom_call.1} parent=39 // pred_region
          %434 = vsyncadd %s426, 0
          %s435 = smul.addr %s19, 8
          %s436 = scalar_lea.hbm %s5, %s435
          %s438 = sshll.u32 %s429, 4
          %s439 = int_to_ptr.vmem [resolvable:$true] %s438
          %s440 = sshll.u32 %s436, 4
          %s441 = int_to_ptr.hbm [resolvable:$true] %s440
          %443 = dma.vmem_to_hbm [thread:$0]  %s439, 128, %s441, %s426
        $region44: #{tpu_custom_call.1} parent=39 // pred_fallthru
          _
      $region40: #{tpu_custom_call.1} parent=5 // pred_fallthru
        _
      %p444 = scmp.le.s32.totalorder 2, %s14
      // Predicated region
      $region45: #{tpu_custom_call.1} parent=5 // pred_check
        %p445 = pneg %p444
      $region46: #{tpu_custom_call.1} parent=5 // pred_check_branch
        %447 = sbr.rel (%p445) target = $region48
      $region47: #{tpu_custom_call.1} parent=5 // pred_region
        %s448 = ssub.s32 %s14, 2
        // Predicated region
        $region49: #{tpu_custom_call.1} parent=47 // pred_check
          %p449 = pneg %p153
        $region50: #{tpu_custom_call.1} parent=47 // pred_check_branch
          %451 = sbr.rel (%p449) target = $region52
        $region51: #{tpu_custom_call.1} parent=47 // pred_region
          %s452 = sand.u32 %s138, 1
          %s453 = scalar_lea.sflag [#allocation3], %s452
          %s454 = sand.u32 %s138, 1
          %s455 = smul.addr %s454, 8
          %s456 = scalar_lea.vmem [#allocation2], %s455
          %458 = dma.done %s453, 128
        $region52: #{tpu_custom_call.1} parent=47 // pred_fallthru
          _
      $region48: #{tpu_custom_call.1} parent=5 // pred_fallthru
        _
    $region6: #{tpu_custom_call.1} parent=1 // loop_footer
      %s18 = sadd.s32 1, %s14
    $region7: #{tpu_custom_call.1} parent=1 // loop_footer_branch
      %13 = sbr.rel target = $region3
    $region8: #{tpu_custom_call.1} parent=1 // loop_exit
      _
    %459 = vsyncpa [#allocation3], 1
    %s460 = scalar_lea.sflag [#allocation3], 1
    %461 = vsyncpa %s460, 1

</llo_original>
